<compile_context>
chip_gen: v5e
topology: v5e:2x2
jax: 0.10.0
libtpu: 0.0.40
codegen_flags: <defaults>
</compile_context>

<pallas_src>
import math

import jax
import jax.numpy as jnp
from jax.experimental import pallas as pl
from jax.experimental.pallas import tpu as pltpu

_LANE = 128
_MIB = 1024 * 1024
_MAX_FOLD = 32  # largest row-fold factor considered for narrow / odd D


def _layer_scale_kernel(x_ref, gamma_ref, o_ref):
    # x_ref / o_ref: (tile_rows, W) tile of the flattened (rows, W) input.
    # gamma_ref: (1, W) — resident across the whole grid (constant index_map).
    o_ref[...] = x_ref[...] * gamma_ref[...]   # one VPU multiply per element


def _round_up(v, m):
    return (v + m - 1) // m * m


def _round_down(v, m):
    return max(m, v // m * m)


def _vmem_capacity_bytes():
    try:
        return int(pltpu.get_tpu_info().vmem_capacity_bytes)
    except Exception:
        return 64 * _MIB  # conservative (v7x per-TC) if the query is unavailable


def layer_scale(x, gamma, *, tile_rows=None, inplace=False):
    """LayerScale forward: x * gamma (gamma broadcast over the last dim).

    Note: gamma is cast to x.dtype before the multiply (autocast-style); for
    LayerScale's ~1e-5 gamma this is indistinguishable from multiplying in f32
    and downcasting the result.
    """
    orig_shape = x.shape
    D = orig_shape[-1]
    rows = math.prod(orig_shape[:-1]) if len(orig_shape) > 1 else 1

    itemsize = jnp.dtype(x.dtype).itemsize
    # Minimum sublane tile per dtype packing: f32 -> 8, bf16 -> 16, int8/fp8 -> 32.
    sublane_min = {4: 8, 2: 16, 1: 32}.get(itemsize, 8)

    x2d = x.reshape(rows, D)
    gamma1d = gamma.reshape(D).astype(x.dtype)

    # Lane-dense block width without zero-padding: fold g rows into one row so
    # the width is a multiple of 128 (g == 1 when D already is). Fall back to
    # the full-D extent (legal block width; boundary stores are masked) when no
    # small g divides `rows`.
    g = _LANE // math.gcd(D, _LANE)
    fold = g if (1 < g <= _MAX_FOLD and rows % g == 0) else 1
    rows2d = rows // fold
    W = fold * D
    if fold > 1:
        x2d = x2d.reshape(rows2d, W)          # contiguous row-major reshape: free
        gamma1d = jnp.tile(gamma1d, fold)     # tiny (W elements)
    gamma2d = gamma1d.reshape(1, W)
    gamma_bytes = W * itemsize

    # Generation-aware block sizing.
    vmem_cap = _vmem_capacity_bytes()
    small_vmem = vmem_cap <= 96 * _MIB                 # v7x-like (64 MiB / TC)
    target_block_bytes = 8 * _MIB if small_vmem else 4 * _MIB
    row_cap = 4096 if small_vmem else 1024
    vmem_budget = 48 * _MIB if small_vmem else 96 * _MIB

    row_bytes = W * itemsize
    if tile_rows is None:
        tile_rows = max(sublane_min, target_block_bytes // row_bytes)
        tile_rows = min(tile_rows, row_cap)
    tile_rows = _round_down(int(tile_rows), sublane_min)
    # Never taller than the (sublane-rounded) input.
    tile_rows = min(tile_rows, _round_up(rows2d, sublane_min))
    # Clamp so 4 double-buffered (in + out) blocks + gamma + headroom fit the
    # per-generation VMEM budget (keeps vmem_limit below self-consistent).
    # TODO(synk): for extremely wide W (one sublane_min-row block > budget/4)
    # the lane dim would also need tiling; not needed for ViT feature widths.
    max_block_bytes = max(vmem_budget - gamma_bytes - 2 * _MIB,
                          4 * sublane_min * row_bytes) // 4
    tile_rows = min(tile_rows, _round_down(max_block_bytes // row_bytes, sublane_min))

    if small_vmem:
        # Guarantee >= 2 grid steps so the "parallel" row axis can shard across
        # v7x's 2 TensorCores (v5e/v6e have a single TC; skip the split there).
        while pl.cdiv(rows2d, tile_rows) < 2 and tile_rows > sublane_min:
            tile_rows = _round_down(tile_rows // 2, sublane_min)

    block_bytes = tile_rows * row_bytes
    # 2 (double-buffer) x 2 (in + out) blocks + resident gamma + headroom.
    vmem_limit = max(16 * _MIB, 4 * block_bytes + gamma_bytes + 2 * _MIB)

    out2d = pl.pallas_call(
        _layer_scale_kernel,
        out_shape=jax.ShapeDtypeStruct((rows2d, W), x.dtype),
        grid_spec=pltpu.PrefetchScalarGridSpec(
            num_scalar_prefetch=0,
            grid=(pl.cdiv(rows2d, tile_rows),),   # ragged last block is masked
            in_specs=[
                pl.BlockSpec((tile_rows, W), lambda i: (i, 0)),
                pl.BlockSpec((1, W), lambda i: (0, 0)),  # resident, never re-DMA'd
            ],
            out_specs=pl.BlockSpec((tile_rows, W), lambda i: (i, 0)),
        ),
        compiler_params=pltpu.CompilerParams(
            dimension_semantics=("parallel",),    # row grid shards across TCs on v7x
            vmem_limit_bytes=int(vmem_limit),
        ),
        # In-place update when the caller donates x (mirrors nn.Module inplace).
        input_output_aliases=({0: 0} if inplace else {}),
    )(x2d, gamma2d)

    return out2d.reshape(orig_shape)


if __name__ == "__main__":
    init_values = 1e-5

    # Case 1: module-sized example (narrow D=32 -> row-fold path, g=4).
    B, N, D = 2, 8, 32
    key = jax.random.PRNGKey(0)
    x = jax.random.normal(key, (B, N, D), dtype=jnp.float32)
    gamma = init_values * jnp.ones((D,), dtype=jnp.float32)

    out = layer_scale(x, gamma)
    jax.block_until_ready(out)

    ref = x * gamma
    assert out.shape == ref.shape and out.dtype == ref.dtype
    assert jnp.allclose(out, ref, atol=1e-6, rtol=1e-6)

    # Case 2: ragged rows (197 tokens) + non-lane-dense D with no small fold
    # factor -> exercises the masked boundary-block / full-D-extent path.
    x2 = jax.random.normal(jax.random.PRNGKey(0), (1, 197, 96), dtype=jnp.float32)
    gamma2 = init_values * jnp.ones((96,), dtype=jnp.float32)
    out2 = layer_scale(x2, gamma2)
    jax.block_until_ready(out2)
    assert jnp.allclose(out2, x2 * gamma2, atol=1e-6, rtol=1e-6)

    print("KERNEL_OK")
</pallas_src>

<mosaic_0001>
module attributes {stable_mosaic.version = 11 : i64} {
  func.func @_layer_scale_kernel(%arg0: i32, %arg1: memref<8x128xf32, #tpu.memory_space<vmem>>, %arg2: memref<1x128xf32, #tpu.memory_space<vmem>>, %arg3: memref<8x128xf32, #tpu.memory_space<vmem>>) attributes {dimension_semantics = [#tpu.dimension_semantics<parallel>], iteration_bounds = array<i64: 1>, scalar_prefetch = 0 : i64, scratch_operands = 0 : i64, tpu.core_type = #tpu.core_type<tc>, window_params = [{transform_indices = @transform_0, window_bounds = array<i64: 8, 128>}, {pipeline_mode = #tpu.pipeline_mode<synchronous>, transform_indices = @transform_1, window_bounds = array<i64: 1, 128>}, {transform_indices = @transform_2, window_bounds = array<i64: 8, 128>}]} {
    %c0 = arith.constant 0 : index
    %c0_0 = arith.constant 0 : index
    %0 = vector.load %arg1[%c0, %c0_0] : memref<8x128xf32, #tpu.memory_space<vmem>>, vector<8x128xf32>
    %c0_1 = arith.constant 0 : index
    %c0_2 = arith.constant 0 : index
    %1 = vector.load %arg2[%c0_1, %c0_2] : memref<1x128xf32, #tpu.memory_space<vmem>>, vector<1x128xf32>
    %2 = vector.broadcast %1 : vector<1x128xf32> to vector<8x128xf32>
    %3 = arith.mulf %0, %2 : vector<8x128xf32>
    %c0_3 = arith.constant 0 : index
    %c0_4 = arith.constant 0 : index
    %4 = vector.load %arg3[%c0_3, %c0_4] : memref<8x128xf32, #tpu.memory_space<vmem>>, vector<8x128xf32>
    tpu.vector_store %arg3[%c0_3, %c0_4], %3 {strides = array<i32>} : memref<8x128xf32, #tpu.memory_space<vmem>>, vector<8x128xf32>,
    return
  }
  func.func @transform_0(%arg0: i32) -> (i32, i32) {
    %c0_i32 = arith.constant 0 : i32
    %c0_i32_0 = arith.constant 0 : i32
    return %arg0, %c0_i32 : i32, i32
  }
  func.func @transform_1(%arg0: i32) -> (i32, i32) {
    %c0_i32 = arith.constant 0 : i32
    %c0_i32_0 = arith.constant 0 : i32
    %c0_i32_1 = arith.constant 0 : i32
    return %c0_i32, %c0_i32_0 : i32, i32
  }
  func.func @transform_2(%arg0: i32) -> (i32, i32) {
    %c0_i32 = arith.constant 0 : i32
    %c0_i32_0 = arith.constant 0 : i32
    return %arg0, %c0_i32 : i32, i32
  }
}

</mosaic_0001>

<llo_original>
// kernel: tpu_custom_call.1
$region0: #{tpu_custom_call.1}
  #allocation0 [shape = 'u32[]', space=smem, size = 0x4, offset = 0x4, fixed_abs, tag = 'smem constant byte address 0x4 - core index']
  #allocation1 [shape = 'u32[72,128]{1,0:T(1,128)}', space=vmem, size = 0x9000, scoped, tag = 'internal scratch']
  %s0 = inlined_call_operand.hbm [shape: f32[4,128], index: 0, kind: input, shape index: {}]
  %s1 = inlined_call_operand.hbm [shape: f32[1,128], index: 1, kind: input, shape index: {}]
  %s2 = inlined_call_operand.hbm [shape: f32[4,128], index: 2, kind: output, shape index: {}]
  %s3 = sld [smem:[#allocation0]]
  $region26: #{tpu_custom_call.1} parent=0
    _
  %s5 = ssub.s32 1, %s3
  %s6 = scalar_select 0, %s5, %s3
  $region1: #{tpu_custom_call.1} parent=0
    #allocation2 [shape = 'u8[4096]{0}', space=vmem, size = 0x1000, scoped, tag = 'input window, operand 0, single buffered']
    #allocation3 [shape = 's32[1]{0}', space=sflag, size = 0x4, scoped, tag = 'scoped memory for tpu_custom_call.1']
    #allocation4 [shape = 's32[1]{0}', space=sflag, size = 0x4, scoped, tag = 'scoped memory for tpu_custom_call.1']
    #allocation5 [shape = 'u8[512]{0}', space=vmem, size = 0x400, scoped, tag = 'input window, operand 1, single buffered']
    #allocation6 [shape = 's32[1]{0}', space=sflag, size = 0x4, scoped, tag = 'scoped memory for tpu_custom_call.1']
    #allocation7 [shape = 'u8[4096]{0}', space=vmem, size = 0x1000, scoped, tag = 'output window, operand 0, single buffered']
    %7 = vsyncpa [#allocation3], 0
    %8 = vsyncpa [#allocation6], 0
    %9 = vsyncpa [#allocation4], 0
    // Predicated region
    $region2: #{tpu_custom_call.1} parent=1 // pred_check
      _
    $region3: #{tpu_custom_call.1} parent=1 // pred_check_branch
      %11 = sbr.rel (0) target = $region5
    $region4: #{tpu_custom_call.1} parent=1 // pred_region
      %13 = vsyncadd [#allocation3], 64
      %s14 = sshll.u32 %s0, 4
      %s15 = int_to_ptr.hbm [resolvable:$true] %s14
      %s16 = sshll.u32 [#allocation2], 4
      %s17 = int_to_ptr.vmem [resolvable:$true] %s16
      %22 = dma.hbm_to_vmem [thread:$0]  %s15, 64, %s17, [#allocation3], 64, 64, 4
    $region5: #{tpu_custom_call.1} parent=1 // pred_fallthru
      _
    // Predicated region
    $region6: #{tpu_custom_call.1} parent=1 // pred_check
      _
    $region7: #{tpu_custom_call.1} parent=1 // pred_check_branch
      %24 = sbr.rel (0) target = $region9
    $region8: #{tpu_custom_call.1} parent=1 // pred_region
      %26 = vsyncadd [#allocation6], 0
      %s28 = sshll.u32 %s1, 4
      %s29 = int_to_ptr.hbm [resolvable:$true] %s28
      %s30 = sshll.u32 [#allocation5], 4
      %s31 = int_to_ptr.vmem [resolvable:$true] %s30
      %33 = dma.hbm_to_vmem [thread:$0]  %s29, 16, %s31, [#allocation6]
    $region9: #{tpu_custom_call.1} parent=1 // pred_fallthru
      _
    // Predicated region
    $region10: #{tpu_custom_call.1} parent=1 // pred_check
      _
    $region11: #{tpu_custom_call.1} parent=1 // pred_check_branch
      %35 = sbr.rel (0) target = $region13
    $region12: #{tpu_custom_call.1} parent=1 // pred_region
      %37 = dma.done [#allocation3], 128
    $region13: #{tpu_custom_call.1} parent=1 // pred_fallthru
      _
    // Predicated region
    $region14: #{tpu_custom_call.1} parent=1 // pred_check
      _
    $region15: #{tpu_custom_call.1} parent=1 // pred_check_branch
      %39 = sbr.rel (0) target = $region17
    $region16: #{tpu_custom_call.1} parent=1 // pred_region
      %41 = dma.done [#allocation6], 16
    $region17: #{tpu_custom_call.1} parent=1 // pred_fallthru
      _
    %v42 = vld [vmem:[#allocation2] sm:$0xff]
    %v43 = vld [vmem:[#allocation5] sm:$0x1]
    %v45 = vperm.slane %v43, 0
    %v47 = vmul.f32 %v42, %v45
    %48 = vst [vmem:[#allocation7] sm:$0xff] %v47
    // Predicated region
    $region18: #{tpu_custom_call.1} parent=1 // pred_check
      _
    $region19: #{tpu_custom_call.1} parent=1 // pred_check_branch
      %50 = sbr.rel (0) target = $region21
    $region20: #{tpu_custom_call.1} parent=1 // pred_region
      %52 = vsyncadd [#allocation4], 64
      %s53 = sshll.u32 [#allocation7], 4
      %s54 = int_to_ptr.vmem [resolvable:$true] %s53
      %s55 = sshll.u32 %s2, 4
      %s56 = int_to_ptr.hbm [resolvable:$true] %s55
      %61 = dma.vmem_to_hbm [thread:$0]  %s54, 64, %s56, [#allocation4], 64, 64, 4
    $region21: #{tpu_custom_call.1} parent=1 // pred_fallthru
      _
    // Predicated region
    $region22: #{tpu_custom_call.1} parent=1 // pred_check
      _
    $region23: #{tpu_custom_call.1} parent=1 // pred_check_branch
      %63 = sbr.rel (0) target = $region25
    $region24: #{tpu_custom_call.1} parent=1 // pred_region
      %65 = dma.done [#allocation4], 128
    $region25: #{tpu_custom_call.1} parent=1 // pred_fallthru
      _
    %66 = vsyncpa [#allocation3], 1
    %67 = vsyncpa [#allocation6], 1
    %68 = vsyncpa [#allocation4], 1

</llo_original>
